<compile_context>
chip_gen: v5e
topology: v5e:2x2
jax: 0.10.0
libtpu: 0.0.40
codegen_flags: <defaults>
</compile_context>

<pallas_src>
import jax
import jax.numpy as jnp
from jax.experimental import pallas as pl
from jax.experimental.pallas import tpu as pltpu

_LANE = 128


def _round_up(v: int, m: int) -> int:
    return ((v + m - 1) // m) * m


def _mlp_kernel(x_ref, w1_ref, b1_ref, w2_ref, b2_ref, o_ref):
    # x_ref : [Bt, D, TM] f32   w1_ref: [H, D] bf16   b1_ref: [H, 1] f32
    # w2_ref: [H, H] bf16       b2_ref: [H, 1] f32    o_ref : [Bt, H, TM] (H == D)
    w1 = w1_ref[...]
    w2 = w2_ref[...]
    b1 = b1_ref[...]
    b2 = b2_ref[...]
    for bi in range(x_ref.shape[0]):            # static unroll over packed batches
        x = x_ref[bi]                           # [D, TM] f32 (kept f32 for residual)
        # fc1 on MXU: bf16 operands, f32 accumulation.
        h = jnp.dot(w1, x.astype(jnp.bfloat16),
                    preferred_element_type=jnp.float32)          # [H, TM]
        h = jnp.maximum(h + b1, 0.0)                              # bias + ReLU (f32)
        # TODO(synk): nn.Dropout(p=0.15) is identity in eval/inference mode;
        # training-mode stochastic masking (pltpu.prng_*) not implemented.
        y = jnp.dot(w2, h.astype(jnp.bfloat16),
                    preferred_element_type=jnp.float32)           # [H, TM]
        o_ref[bi] = (y + b2 + x).astype(o_ref.dtype)              # bias + residual fused


def _pick_tm(m: int) -> int:
    # Full extent is always a legal block size; cap at 8192 lanes
    # (32 x 8192 x 4B = 1 MiB per x tile) to amortize per-step overhead.
    return m if m <= 8192 else 8192


def _pick_bt(be: int, tm: int) -> int:
    # Pack several [D, TM] tiles per grid step when the spatial tile is small,
    # amortizing the ~0.35us step overhead.  Only divisors of Be keep the grid exact.
    for cand in (8, 4, 2):
        if be % cand == 0 and cand * tm <= 8192:
            return cand
    return 1


def _mlp_core(x_bdm, w1_bf, b1_col, w2_bf, b2_col):
    """x_bdm: [Be, D, M] f32 -> [Be, H, M] f32."""
    Be, D, M = x_bdm.shape
    H = w1_bf.shape[0]

    TM = _pick_tm(M)
    Bt = _pick_bt(Be, TM)

    # Guarantee >=2 grid steps along a "parallel" axis when possible, so both
    # TensorCores are busy on v7x (extra step is negligible on 1-TC v5e/v6e).
    n_steps = (Be // Bt) * pl.cdiv(M, TM)
    if n_steps == 1:
        if M >= 2 * _LANE:
            TM = _round_up(pl.cdiv(M, 2), _LANE)
        elif Bt > 1:
            Bt //= 2

    grid = (Be // Bt, pl.cdiv(M, TM))

    return pl.pallas_call(
        _mlp_kernel,
        out_shape=jax.ShapeDtypeStruct((Be, H, M), x_bdm.dtype),
        grid=grid,
        in_specs=[
            pl.BlockSpec((Bt, D, TM), lambda b, m: (b, 0, m)),   # x tiles, pipelined
            pl.BlockSpec((H, D), lambda b, m: (0, 0)),           # w1 (VMEM-resident)
            pl.BlockSpec((H, 1), lambda b, m: (0, 0)),           # b1 (VMEM-resident)
            pl.BlockSpec((H, H), lambda b, m: (0, 0)),           # w2 (VMEM-resident)
            pl.BlockSpec((H, 1), lambda b, m: (0, 0)),           # b2 (VMEM-resident)
        ],
        out_specs=pl.BlockSpec((Bt, H, TM), lambda b, m: (b, 0, m)),
        compiler_params=pltpu.CompilerParams(
            dimension_semantics=("parallel", "parallel"),
            # Double-buffered in+out tiles at <=8192 lanes * 32ch * 4B ~= 4 MiB
            # plus scratch -- well inside v7x's 64 MiB physical VMEM.
            vmem_limit_bytes=32 * 1024 * 1024,
        ),
    )(x_bdm, w1_bf, b1_col, w2_bf, b2_col)


def mlp_one_fc(x_nchw, w1, b1, w2, b2):
    """x_nchw: [B, D, N, W] f32. w1: [H, D, 1, 1], b1: [H], w2: [H, H, 1, 1], b2: [H]."""
    B, D, N, W = x_nchw.shape
    H = w1.shape[0]
    assert H == D, "residual link requires hidden_dim == input_dim"

    NW = N * W
    x_flat = x_nchw.reshape(B, D, NW)            # contiguous reshape only
    w1_bf = w1[:, :, 0, 0].astype(jnp.bfloat16)  # [H, D] bf16 (MXU operands)
    w2_bf = w2[:, :, 0, 0].astype(jnp.bfloat16)  # [H, H] bf16
    b1_col = b1.reshape(H, 1).astype(jnp.float32)
    b2_col = b2.reshape(H, 1).astype(jnp.float32)

    if NW < _LANE:
        # Lane-starved spatial extent: fold batch into the lane axis so stores
        # are lane-dense and the whole tensor is covered by a few big steps.
        M = B * NW
        x_slab = jnp.transpose(x_flat, (1, 0, 2)).reshape(D, M)   # [D, B*NW]
        M_pad = _round_up(max(M, _LANE), _LANE)
        if M_pad != M:
            x_slab = jnp.pad(x_slab, ((0, 0), (0, M_pad - M)))
        out = _mlp_core(x_slab[None], w1_bf, b1_col, w2_bf, b2_col)  # [1, H, M_pad]
        out = out[0, :, :M].reshape(H, B, NW)
        out = jnp.transpose(out, (1, 0, 2))                          # [B, H, NW]
    else:
        out = _mlp_core(x_flat, w1_bf, b1_col, w2_bf, b2_col)        # [B, H, NW]

    return out.reshape(B, H, N, W)


if __name__ == "__main__":
    key = jax.random.PRNGKey(0)
    k_x, k_w1, k_b1, k_w2, k_b2 = jax.random.split(key, 5)

    # Small shapes consistent with the module: B=2, D=hidden=32, N=16, W=1
    B, D, N, W = 2, 32, 16, 1
    H = D

    x = jax.random.normal(k_x, (B, D, N, W), dtype=jnp.float32)
    w1 = jax.random.normal(k_w1, (H, D, 1, 1), dtype=jnp.float32) * 0.1
    b1 = jax.random.normal(k_b1, (H,), dtype=jnp.float32) * 0.1
    w2 = jax.random.normal(k_w2, (H, H, 1, 1), dtype=jnp.float32) * 0.1
    b2 = jax.random.normal(k_b2, (H,), dtype=jnp.float32) * 0.1

    out = mlp_one_fc(x, w1, b1, w2, b2)
    jax.block_until_ready(out)

    # Pure-JAX f32 reference (1x1 conv == per-position linear), eval-mode dropout.
    x_flat = x.reshape(B, D, N * W)
    h_ref = jnp.maximum(
        jnp.einsum("hd,bdm->bhm", w1[:, :, 0, 0], x_flat) + b1[None, :, None], 0.0
    )
    y_ref = (
        jnp.einsum("oh,bhm->bom", w2[:, :, 0, 0], h_ref) + b2[None, :, None] + x_flat
    )
    ref = y_ref.reshape(B, H, N, W)

    # Looser tolerance: kernel matmuls use bf16 operands (f32 accumulation).
    assert jnp.allclose(out, ref, atol=2e-2, rtol=2e-2), float(
        jnp.max(jnp.abs(out - ref))
    )
    print("KERNEL_OK")
</pallas_src>

<mosaic_0001>
module attributes {stable_mosaic.version = 11 : i64} {
  func.func @_mlp_kernel(%arg0: i32, %arg1: i32, %arg2: memref<1x32x128xf32, #tpu.memory_space<vmem>>, %arg3: memref<32x32xbf16, #tpu.memory_space<vmem>>, %arg4: memref<32x1xf32, #tpu.memory_space<vmem>>, %arg5: memref<32x32xbf16, #tpu.memory_space<vmem>>, %arg6: memref<32x1xf32, #tpu.memory_space<vmem>>, %arg7: memref<1x32x128xf32, #tpu.memory_space<vmem>>) attributes {dimension_semantics = [#tpu.dimension_semantics<parallel>, #tpu.dimension_semantics<parallel>], iteration_bounds = array<i64: 1, 1>, scalar_prefetch = 0 : i64, scratch_operands = 0 : i64, tpu.core_type = #tpu.core_type<tc>, window_params = [{transform_indices = @transform_0, window_bounds = array<i64: 1, 32, 128>}, {pipeline_mode = #tpu.pipeline_mode<synchronous>, transform_indices = @transform_1, window_bounds = array<i64: 32, 32>}, {pipeline_mode = #tpu.pipeline_mode<synchronous>, transform_indices = @transform_2, window_bounds = array<i64: 32, 1>}, {pipeline_mode = #tpu.pipeline_mode<synchronous>, transform_indices = @transform_3, window_bounds = array<i64: 32, 32>}, {pipeline_mode = #tpu.pipeline_mode<synchronous>, transform_indices = @transform_4, window_bounds = array<i64: 32, 1>}, {transform_indices = @transform_5, window_bounds = array<i64: 1, 32, 128>}]} {
    %c0 = arith.constant 0 : index
    %c0_0 = arith.constant 0 : index
    %0 = vector.load %arg3[%c0, %c0_0] : memref<32x32xbf16, #tpu.memory_space<vmem>>, vector<32x32xbf16>
    %c0_1 = arith.constant 0 : index
    %c0_2 = arith.constant 0 : index
    %1 = vector.load %arg5[%c0_1, %c0_2] : memref<32x32xbf16, #tpu.memory_space<vmem>>, vector<32x32xbf16>
    %c0_3 = arith.constant 0 : index
    %c0_4 = arith.constant 0 : index
    %2 = vector.load %arg4[%c0_3, %c0_4] : memref<32x1xf32, #tpu.memory_space<vmem>>, vector<32x1xf32>
    %c0_5 = arith.constant 0 : index
    %c0_6 = arith.constant 0 : index
    %3 = vector.load %arg6[%c0_5, %c0_6] : memref<32x1xf32, #tpu.memory_space<vmem>>, vector<32x1xf32>
    %c0_7 = arith.constant 0 : index
    %c0_8 = arith.constant 0 : index
    %c0_9 = arith.constant 0 : index
    %4 = vector.load %arg2[%c0_7, %c0_8, %c0_9] : memref<1x32x128xf32, #tpu.memory_space<vmem>>, vector<1x32x128xf32>
    %5 = vector.shape_cast %4 : vector<1x32x128xf32> to vector<32x128xf32>
    %6 = arith.truncf %5 : vector<32x128xf32> to vector<32x128xbf16>
    %cst = arith.constant dense<0.000000e+00> : vector<32x128xf32>
    %7 = tpu.matmul %0, %6, %cst {dimension_numbers = #tpu.dot_dimension_numbers<[1], [0], [0], [1], [0, 0, 1, 1], [], []>} : vector<32x32xbf16>, vector<32x128xbf16>, vector<32x128xf32> -> vector<32x128xf32>
    %8 = vector.broadcast %2 : vector<32x1xf32> to vector<32x128xf32>
    %9 = arith.addf %7, %8 : vector<32x128xf32>
    %cst_10 = arith.constant 0.000000e+00 : f32
    %10 = vector.broadcast %cst_10 : f32 to vector<32x128xf32>
    %11 = arith.maximumf %9, %10 : vector<32x128xf32>
    %12 = arith.truncf %11 : vector<32x128xf32> to vector<32x128xbf16>
    %cst_11 = arith.constant dense<0.000000e+00> : vector<32x128xf32>
    %13 = tpu.matmul %1, %12, %cst_11 {dimension_numbers = #tpu.dot_dimension_numbers<[1], [0], [0], [1], [0, 0, 1, 1], [], []>} : vector<32x32xbf16>, vector<32x128xbf16>, vector<32x128xf32> -> vector<32x128xf32>
    %14 = vector.broadcast %3 : vector<32x1xf32> to vector<32x128xf32>
    %15 = arith.addf %13, %14 : vector<32x128xf32>
    %16 = arith.addf %15, %5 : vector<32x128xf32>
    %c0_12 = arith.constant 0 : index
    %c0_13 = arith.constant 0 : index
    %c0_14 = arith.constant 0 : index
    %17 = vector.load %arg7[%c0_12, %c0_13, %c0_14] : memref<1x32x128xf32, #tpu.memory_space<vmem>>, vector<1x32x128xf32>
    %18 = vector.shape_cast %17 : vector<1x32x128xf32> to vector<32x128xf32>
    %19 = vector.shape_cast %16 : vector<32x128xf32> to vector<1x32x128xf32>
    tpu.vector_store %arg7[%c0_12, %c0_13, %c0_14], %19 {strides = array<i32>} : memref<1x32x128xf32, #tpu.memory_space<vmem>>, vector<1x32x128xf32>,
    return
  }
  func.func @transform_0(%arg0: i32, %arg1: i32) -> (i32, i32, i32) {
    %c0_i32 = arith.constant 0 : i32
    %c0_i32_0 = arith.constant 0 : i32
    return %arg0, %c0_i32, %arg1 : i32, i32, i32
  }
  func.func @transform_1(%arg0: i32, %arg1: i32) -> (i32, i32) {
    %c0_i32 = arith.constant 0 : i32
    %c0_i32_0 = arith.constant 0 : i32
    %c0_i32_1 = arith.constant 0 : i32
    return %c0_i32, %c0_i32_0 : i32, i32
  }
  func.func @transform_2(%arg0: i32, %arg1: i32) -> (i32, i32) {
    %c0_i32 = arith.constant 0 : i32
    %c0_i32_0 = arith.constant 0 : i32
    %c0_i32_1 = arith.constant 0 : i32
    return %c0_i32, %c0_i32_0 : i32, i32
  }
  func.func @transform_3(%arg0: i32, %arg1: i32) -> (i32, i32) {
    %c0_i32 = arith.constant 0 : i32
    %c0_i32_0 = arith.constant 0 : i32
    %c0_i32_1 = arith.constant 0 : i32
    return %c0_i32, %c0_i32_0 : i32, i32
  }
  func.func @transform_4(%arg0: i32, %arg1: i32) -> (i32, i32) {
    %c0_i32 = arith.constant 0 : i32
    %c0_i32_0 = arith.constant 0 : i32
    %c0_i32_1 = arith.constant 0 : i32
    return %c0_i32, %c0_i32_0 : i32, i32
  }
  func.func @transform_5(%arg0: i32, %arg1: i32) -> (i32, i32, i32) {
    %c0_i32 = arith.constant 0 : i32
    %c0_i32_0 = arith.constant 0 : i32
    return %arg0, %c0_i32, %arg1 : i32, i32, i32
  }
}

</mosaic_0001>

<llo_original>
// kernel: tpu_custom_call.1
$region0: #{tpu_custom_call.1}
  #allocation0 [shape = 'u32[]', space=smem, size = 0x4, offset = 0x4, fixed_abs, tag = 'smem constant byte address 0x4 - core index']
  #allocation1 [shape = 'u32[72,128]{1,0:T(1,128)}', space=vmem, size = 0x9000, scoped, tag = 'internal scratch']
  %s0 = inlined_call_operand.vmem [shape: f32[1,32,128], index: 0, kind: input, shape index: {}]
  %s1 = inlined_call_operand.vmem [shape: bf16[32,32], index: 1, kind: input, shape index: {}]
  %s2 = inlined_call_operand.vmem [shape: f32[32,1], index: 2, kind: input, shape index: {}]
  %s3 = inlined_call_operand.vmem [shape: bf16[32,32], index: 3, kind: input, shape index: {}]
  %s4 = inlined_call_operand.vmem [shape: f32[32,1], index: 4, kind: input, shape index: {}]
  %s5 = inlined_call_operand.hbm [shape: f32[1,32,128], index: 5, kind: output, shape index: {}]
  %s6 = sld [smem:[#allocation0]]
  $region30: #{tpu_custom_call.1} parent=0
    _
  %s8 = ssub.s32 1, %s6
  %s9 = scalar_select 0, %s8, %s6
  $region1: #{tpu_custom_call.1} parent=0
    #allocation2 [shape = 'u8[16384]{0}', space=vmem, size = 0x4000, scoped, tag = 'output window, operand 0, single buffered']
    #allocation3 [shape = 's32[1]{0}', space=sflag, size = 0x4, scoped, tag = 'scoped memory for tpu_custom_call.1']
    %10 = vsyncpa [#allocation3], 0
    // Predicated region
    $region2: #{tpu_custom_call.1} parent=1 // pred_check
      _
    $region3: #{tpu_custom_call.1} parent=1 // pred_check_branch
      %12 = sbr.rel (0) target = $region5
    $region4: #{tpu_custom_call.1} parent=1 // pred_region
      _
    $region5: #{tpu_custom_call.1} parent=1 // pred_fallthru
      _
    // Predicated region
    $region6: #{tpu_custom_call.1} parent=1 // pred_check
      _
    $region7: #{tpu_custom_call.1} parent=1 // pred_check_branch
      %14 = sbr.rel (0) target = $region9
    $region8: #{tpu_custom_call.1} parent=1 // pred_region
      _
    $region9: #{tpu_custom_call.1} parent=1 // pred_fallthru
      _
    // Predicated region
    $region10: #{tpu_custom_call.1} parent=1 // pred_check
      _
    $region11: #{tpu_custom_call.1} parent=1 // pred_check_branch
      %16 = sbr.rel (0) target = $region13
    $region12: #{tpu_custom_call.1} parent=1 // pred_region
      _
    $region13: #{tpu_custom_call.1} parent=1 // pred_fallthru
      _
    // Predicated region
    $region14: #{tpu_custom_call.1} parent=1 // pred_check
      _
    $region15: #{tpu_custom_call.1} parent=1 // pred_check_branch
      %18 = sbr.rel (0) target = $region17
    $region16: #{tpu_custom_call.1} parent=1 // pred_region
      _
    $region17: #{tpu_custom_call.1} parent=1 // pred_fallthru
      _
    // Predicated region
    $region18: #{tpu_custom_call.1} parent=1 // pred_check
      _
    $region19: #{tpu_custom_call.1} parent=1 // pred_check_branch
      %20 = sbr.rel (0) target = $region21
    $region20: #{tpu_custom_call.1} parent=1 // pred_region
      _
    $region21: #{tpu_custom_call.1} parent=1 // pred_fallthru
      _
    %v22 = vld [vmem:[%s1] sm:$0xf]
    %v23 = vld [vmem:[%s1 + $0x4] sm:$0xf]
    %v24 = vld [vmem:[%s1 + $0x8] sm:$0xf]
    %v25 = vld [vmem:[%s1 + $0xc] sm:$0xf]
    %v26 = vld [vmem:[%s3] sm:$0xf]
    %v27 = vld [vmem:[%s3 + $0x4] sm:$0xf]
    %v28 = vld [vmem:[%s3 + $0x8] sm:$0xf]
    %v29 = vld [vmem:[%s3 + $0xc] sm:$0xf]
    %v30 = vld [vmem:[%s2] sm:$0xff]
    %v31 = vld [vmem:[%s2 + $0x8] sm:$0xff]
    %v32 = vld [vmem:[%s2 + $0x10] sm:$0xff]
    %v33 = vld [vmem:[%s2 + $0x18] sm:$0xff]
    %v34 = vld [vmem:[%s4] sm:$0xff]
    %v35 = vld [vmem:[%s4 + $0x8] sm:$0xff]
    %v36 = vld [vmem:[%s4 + $0x10] sm:$0xff]
    %v37 = vld [vmem:[%s4 + $0x18] sm:$0xff]
    %v38 = vld [vmem:[%s0] sm:$0xff]
    %v39 = vld [vmem:[%s0 + $0x8] sm:$0xff]
    %v40 = vld [vmem:[%s0 + $0x10] sm:$0xff]
    %v41 = vld [vmem:[%s0 + $0x18] sm:$0xff]
    %v42 = vpack.c.bf16 %v39, %v38
    %v43 = vpack.c.bf16 %v41, %v40
    %45 = vset.pattern.permute.xlu0 0
    %46 = vperm.xlu0 %45, %v30
    %v47 = vpop.permute.xlu0 %46
    %50 = vset.pattern.permute.xlu0 0
    %51 = vperm.xlu0 %50, %v31
    %v52 = vpop.permute.xlu0 %51
    %55 = vset.pattern.permute.xlu0 0
    %56 = vperm.xlu0 %55, %v32
    %v57 = vpop.permute.xlu0 %56
    %60 = vset.pattern.permute.xlu0 0
    %61 = vperm.xlu0 %60, %v33
    %v62 = vpop.permute.xlu0 %61
    %v68 = vunpack.c.l.b16 %v22
    %v69 = vunpack.c.l.b16 %v23
    %v70 = vunpack.c.l.b16 %v24
    %v71 = vunpack.c.l.b16 %v25
    %v72 = vpack.c.b16 %v69, %v68
    %v73 = vpack.c.b16 %v71, %v70
    %vm74 = vcmask 261120
    %v76 = vsel %vm74, %v72, 0
    %v79 = vsel %vm74, %v73, 0
    %81 = vmatpush.bf16.msra.mxu0 0
    %82 = vmatpush.bf16.msra.mxu0 0
    %83 = vmatpush.bf16.msra.mxu0 0
    %84 = vmatpush.bf16.msra.mxu0 0
    %85 = vmatpush.bf16.msra.mxu0 0
    %86 = vmatpush.bf16.msra.mxu0 0
    %87 = vmatpush.bf16.msra.mxu0 %v43
    %88 = vmatpush.bf16.msra.mxu0 %v42
    %89 = vmatmul.bf16.gmra.mxu0 %v76
    %v90 = vpop.f32.mrf.mxu0
    %v91 = vadd.f32 %v47, %v90
    %v92 = vpop.f32.mrf.mxu0
    %v93 = vadd.f32 %v52, %v92
    %94 = vmatmul.bf16.gmra.mxu0 %v79
    %v95 = vpop.f32.mrf.mxu0
    %v96 = vadd.f32 %v57, %v95
    %v97 = vpop.f32.mrf.mxu0
    %v98 = vadd.f32 %v62, %v97
    %99 = vdwg.mxu0
    %v100 = vmax.f32 %v91, 0.0
    %v101 = vmax.f32 %v93, 0.0
    %v102 = vmax.f32 %v96, 0.0
    %v103 = vmax.f32 %v98, 0.0
    %v104 = vpack.c.bf16 %v101, %v100
    %v105 = vpack.c.bf16 %v103, %v102
    %107 = vset.pattern.permute.xlu0 0
    %108 = vperm.xlu0 %107, %v34
    %v109 = vpop.permute.xlu0 %108
    %112 = vset.pattern.permute.xlu0 0
    %113 = vperm.xlu0 %112, %v35
    %v114 = vpop.permute.xlu0 %113
    %117 = vset.pattern.permute.xlu0 0
    %118 = vperm.xlu0 %117, %v36
    %v119 = vpop.permute.xlu0 %118
    %122 = vset.pattern.permute.xlu0 0
    %123 = vperm.xlu0 %122, %v37
    %v124 = vpop.permute.xlu0 %123
    %v130 = vunpack.c.l.b16 %v26
    %v131 = vunpack.c.l.b16 %v27
    %v132 = vunpack.c.l.b16 %v28
    %v133 = vunpack.c.l.b16 %v29
    %v134 = vpack.c.b16 %v131, %v130
    %v135 = vpack.c.b16 %v133, %v132
    %v137 = vsel %vm74, %v134, 0
    %v140 = vsel %vm74, %v135, 0
    %142 = vmatpush.bf16.msra.mxu0 0
    %143 = vmatpush.bf16.msra.mxu0 0
    %144 = vmatpush.bf16.msra.mxu0 0
    %145 = vmatpush.bf16.msra.mxu0 0
    %146 = vmatpush.bf16.msra.mxu0 0
    %147 = vmatpush.bf16.msra.mxu0 0
    %148 = vmatpush.bf16.msra.mxu0 %v105
    %149 = vmatpush.bf16.msra.mxu0 %v104
    %150 = vmatmul.bf16.gmra.mxu0 %v137
    %v151 = vpop.f32.mrf.mxu0
    %v152 = vadd.f32 %v109, %v151
    %v153 = vpop.f32.mrf.mxu0
    %v154 = vadd.f32 %v114, %v153
    %155 = vmatmul.bf16.gmra.mxu0 %v140
    %v156 = vpop.f32.mrf.mxu0
    %v157 = vadd.f32 %v119, %v156
    %v158 = vpop.f32.mrf.mxu0
    %v159 = vadd.f32 %v124, %v158
    %160 = vdwg.mxu0
    %v161 = vadd.f32 %v152, %v38
    %v162 = vadd.f32 %v154, %v39
    %v163 = vadd.f32 %v157, %v40
    %v164 = vadd.f32 %v159, %v41
    %165 = vst [vmem:[#allocation2] sm:$0xff] %v161
    %166 = vst [vmem:[#allocation2 + $0x8] sm:$0xff] %v162
    %167 = vst [vmem:[#allocation2 + $0x10] sm:$0xff] %v163
    %168 = vst [vmem:[#allocation2 + $0x18] sm:$0xff] %v164
    // Predicated region
    $region22: #{tpu_custom_call.1} parent=1 // pred_check
      _
    $region23: #{tpu_custom_call.1} parent=1 // pred_check_branch
      %170 = sbr.rel (0) target = $region25
    $region24: #{tpu_custom_call.1} parent=1 // pred_region
      %172 = vsyncadd [#allocation3], 0
      %s173 = sshll.u32 [#allocation2], 4
      %s174 = int_to_ptr.vmem [resolvable:$true] %s173
      %s175 = sshll.u32 %s5, 4
      %s176 = int_to_ptr.hbm [resolvable:$true] %s175
      %181 = dma.vmem_to_hbm [thread:$0]  %s174, 512, %s176, [#allocation3], 128, 128, 8
    $region25: #{tpu_custom_call.1} parent=1 // pred_fallthru
      _
    // Predicated region
    $region26: #{tpu_custom_call.1} parent=1 // pred_check
      _
    $region27: #{tpu_custom_call.1} parent=1 // pred_check_branch
      %183 = sbr.rel (0) target = $region29
    $region28: #{tpu_custom_call.1} parent=1 // pred_region
      %185 = dma.done [#allocation3], 512
    $region29: #{tpu_custom_call.1} parent=1 // pred_fallthru
      _
    %186 = vsyncpa [#allocation3], 1

</llo_original>
